<compile_context>
chip_gen: v6e
topology: v6e:2x2x1
jax: 0.10.0
libtpu: 0.0.40
codegen_flags: <defaults>
</compile_context>

<pallas_src>
import functools

import jax
import jax.numpy as jnp
from jax.experimental import pallas as pl
from jax.experimental.pallas import tpu as pltpu


_XO_BLOCK_TARGET_BYTES = 3 * 1024 * 1024         # ~2-4 MiB blocks hit the HBM roofline
_FALLBACK_BLOCK_TARGET_BYTES = 6 * 1024 * 1024   # per-block target, two-pass squeeze
_VMEM_HEADROOM_BYTES = 2 * 1024 * 1024           # compiler-internal scratch headroom
_DEFAULT_VMEM_CAPACITY_BYTES = 64 * 1024 * 1024  # conservative (v7x) if detection fails


def _round_up(n, m):
    return ((n + m - 1) // m) * m


def _sublane(dtype):
    # 8 for f32, 16 for bf16, 32 for int8/fp8 (packed sublanes).
    return max(8, 32 // jnp.dtype(dtype).itemsize)


def _padded_tile_bytes(rows, cols, dtype):
    """VMEM footprint of a (rows, cols) tile including (sublane, 128) padding."""
    it = jnp.dtype(dtype).itemsize
    return _round_up(max(rows, 1), _sublane(dtype)) * _round_up(max(cols, 1), 128) * it


def _vmem_capacity_bytes():
    try:
        cap = int(pltpu.get_tpu_info().vmem_capacity_bytes)
        if cap > 0:
            return cap
    except Exception:
        pass
    return _DEFAULT_VMEM_CAPACITY_BYTES


def _num_tensorcores():
    try:
        info = pltpu.get_tpu_info()
        for name in ("num_cores", "core_count", "num_tensorcores"):
            v = getattr(info, name, None)
            if v:
                return max(1, int(v))
    except Exception:
        pass
    try:
        d = jax.devices()[0]
        for name in ("num_cores", "core_count"):
            v = getattr(d, name, None)
            if isinstance(v, int) and v > 0:
                return v
    except Exception:
        pass
    return 1


# ---------------------------------------------------------------------------
# Single-pass kernel: each grid step streams one (Bt, C, HW) block and does
# squeeze + excitation + scale entirely in VMEM.
# ---------------------------------------------------------------------------
def _se_kernel(x_ref, w1_ref, w2_ref, o_ref, *, inv_hw):
    x = x_ref[...]                                           # (Bt, C, HW), input dtype
    # Squeeze: global average pool = sum * (1/HW), accumulated in f32.
    se = jnp.sum(x, axis=2, dtype=jnp.float32) * inv_hw      # (Bt, C)
    # Excitation: Linear(C->C/r) -> ReLU -> Linear(C/r->C) -> Sigmoid.
    # Contract over in_features (dim 1) of the PyTorch (out, in) weights.
    # Feed the MXU operands in the weights' native dtype.
    h = jax.lax.dot_general(
        se.astype(w1_ref.dtype), w1_ref[...],
        dimension_numbers=(((1,), (1,)), ((), ())),
        preferred_element_type=jnp.float32)
    h = jnp.maximum(h, 0.0)
    s = jax.lax.dot_general(
        h.astype(w2_ref.dtype), w2_ref[...],
        dimension_numbers=(((1,), (1,)), ((), ())),
        preferred_element_type=jnp.float32)
    s = jax.nn.sigmoid(s).astype(x.dtype)                    # (Bt, C)
    # Scale: broadcast the per-(batch, channel) gate over the spatial lanes.
    o_ref[...] = (x * s[:, :, None]).astype(o_ref.dtype)


def _se_single_pass(x3, w1, w2, *, inv_hw, vmem_limit, slab_bytes, w_live_bytes):
    B, C, HW = x3.shape
    limit_budget = max(slab_bytes,
                       (vmem_limit - w_live_bytes - _VMEM_HEADROOM_BYTES) // 4)
    per_block_budget = min(_XO_BLOCK_TARGET_BYTES, limit_budget)
    bt = max(1, min(B, per_block_budget // slab_bytes))

    num_cores = _num_tensorcores()
    if num_cores >= 2 and B >= 2:
        # Balance the "parallel" grid axis across TensorCores (v7x megacore):
        # keep the step count a multiple of the core count with equal blocks
        # when that is possible.  Gated on core count so single-core parts
        # don't pay extra per-step overhead.
        bt = max(1, min(bt, B // 2))
        while bt > 1 and (B % bt != 0 or (B // bt) % num_cores != 0):
            bt -= 1

    grid = (pl.cdiv(B, bt),)
    blk = (bt, C, HW)
    kernel = functools.partial(_se_kernel, inv_hw=inv_hw)
    return pl.pallas_call(
        kernel,
        out_shape=jax.ShapeDtypeStruct(x3.shape, x3.dtype),
        grid_spec=pltpu.PrefetchScalarGridSpec(
            num_scalar_prefetch=0,
            grid=grid,
            in_specs=[
                pl.BlockSpec(blk, lambda b: (b, 0, 0)),
                # Tiny, grid-invariant weights; their double buffers are part
                # of the VMEM budget (w_live_bytes).
                pl.BlockSpec(w1.shape, lambda b: (0, 0)),
                pl.BlockSpec(w2.shape, lambda b: (0, 0)),
            ],
            out_specs=pl.BlockSpec(blk, lambda b: (b, 0, 0)),
        ),
        compiler_params=pltpu.CompilerParams(
            dimension_semantics=("parallel",),
            vmem_limit_bytes=vmem_limit,
        ),
    )(x3, w1, w2)


# ---------------------------------------------------------------------------
# Two-pass fallback for large per-batch (C, HW) slabs:
#   pass 1: channel-tiled squeeze -> pooled (B, 1, C) f32
#   pass 2: tiny excitation MLP   -> gate   (B, 1, C)
#   pass 3: lane-dense channel-wise scale of x
# ---------------------------------------------------------------------------
def _squeeze_kernel(x_ref, p_ref, *, inv_hw):
    # x_ref: (1, t_c, HW) -> p_ref: (1, 1, t_c) in f32.
    se = jnp.sum(x_ref[...], axis=2, dtype=jnp.float32) * inv_hw
    p_ref[...] = se[:, None, :]


def _excite_kernel(p_ref, w1_ref, w2_ref, g_ref):
    # p_ref: (B, 1, C) f32 pooled; g_ref: (B, 1, C) gate in activation dtype.
    se = p_ref[...][:, 0, :]                                  # (B, C)
    h = jax.lax.dot_general(
        se.astype(w1_ref.dtype), w1_ref[...],
        dimension_numbers=(((1,), (1,)), ((), ())),
        preferred_element_type=jnp.float32)
    h = jnp.maximum(h, 0.0)
    s = jax.lax.dot_general(
        h.astype(w2_ref.dtype), w2_ref[...],
        dimension_numbers=(((1,), (1,)), ((), ())),
        preferred_element_type=jnp.float32)
    g_ref[...] = jax.nn.sigmoid(s).astype(g_ref.dtype)[:, None, :]


def _scale_kernel(x_ref, g_ref, o_ref):
    # x_ref: (1, t_c, t_hw); g_ref: (1, t_c, 1) broadcasts over spatial lanes.
    o_ref[...] = (x_ref[...] * g_ref[...]).astype(o_ref.dtype)


def _se_two_pass(x3, w1, w2, *, inv_hw, vmem_limit):
    B, C, HW = x3.shape
    itemsize = jnp.dtype(x3.dtype).itemsize
    row_bytes = _round_up(HW, 128) * itemsize

    # Channel tile: a multiple of 128 (lane width of the pooled output) or all of C.
    if C % 128 == 0 and C > 128:
        t_c = min(C, max(128, (_FALLBACK_BLOCK_TARGET_BYTES // row_bytes) // 128 * 128))
    else:
        t_c = C
    # TODO(synk): if even a single (t_c, HW) slab exceeds VMEM (huge feature map
    # with few channels), an HW-tiled accumulating squeeze would be needed.
    n_c = pl.cdiv(C, t_c)

    # ---- pass 1: pooled squeeze -------------------------------------------
    pooled = pl.pallas_call(
        functools.partial(_squeeze_kernel, inv_hw=inv_hw),
        out_shape=jax.ShapeDtypeStruct((B, 1, C), jnp.float32),
        grid_spec=pltpu.PrefetchScalarGridSpec(
            num_scalar_prefetch=0,
            grid=(B, n_c),
            in_specs=[pl.BlockSpec((1, t_c, HW), lambda b, c: (b, c, 0))],
            out_specs=pl.BlockSpec((1, 1, t_c), lambda b, c: (b, 0, c)),
        ),
        compiler_params=pltpu.CompilerParams(
            dimension_semantics=("parallel", "parallel"),
            vmem_limit_bytes=vmem_limit,
        ),
    )(x3)

    # ---- pass 2: excitation MLP (tiny, one grid step) ----------------------
    gate = pl.pallas_call(
        _excite_kernel,
        out_shape=jax.ShapeDtypeStruct((B, 1, C), x3.dtype),
        grid_spec=pltpu.PrefetchScalarGridSpec(
            num_scalar_prefetch=0,
            grid=(1,),
            in_specs=[
                pl.BlockSpec((B, 1, C), lambda i: (0, 0, 0)),
                pl.BlockSpec(w1.shape, lambda i: (0, 0)),
                pl.BlockSpec(w2.shape, lambda i: (0, 0)),
            ],
            out_specs=pl.BlockSpec((B, 1, C), lambda i: (0, 0, 0)),
        ),
        compiler_params=pltpu.CompilerParams(
            dimension_semantics=("arbitrary",),
            vmem_limit_bytes=vmem_limit,
        ),
    )(pooled, w1, w2)

    # Tiny (B*C element) relayout so the gate lands on sublanes for broadcasting.
    gate_c1 = jnp.transpose(gate, (0, 2, 1))                  # (B, C, 1)

    # ---- pass 3: lane-dense channel-wise scale ------------------------------
    lane_budget = max(128, (_XO_BLOCK_TARGET_BYTES // max(1, t_c * itemsize)) // 128 * 128)
    t_hw = HW if HW <= lane_budget else lane_budget
    n_hw = pl.cdiv(HW, t_hw)
    out3 = pl.pallas_call(
        _scale_kernel,
        out_shape=jax.ShapeDtypeStruct(x3.shape, x3.dtype),
        grid_spec=pltpu.PrefetchScalarGridSpec(
            num_scalar_prefetch=0,
            grid=(B, n_c, n_hw),
            in_specs=[
                pl.BlockSpec((1, t_c, t_hw), lambda b, c, h: (b, c, h)),
                pl.BlockSpec((1, t_c, 1), lambda b, c, h: (b, c, 0)),
            ],
            out_specs=pl.BlockSpec((1, t_c, t_hw), lambda b, c, h: (b, c, h)),
        ),
        compiler_params=pltpu.CompilerParams(
            dimension_semantics=("parallel", "parallel", "parallel"),
            vmem_limit_bytes=vmem_limit,
        ),
    )(x3, gate_c1)
    return out3


# ---------------------------------------------------------------------------
# Public wrapper
# ---------------------------------------------------------------------------
def se_module(x, w1, w2, *, force_two_pass=False):
    """Forward pass of SEModule.

    x : (B, C, H, W) activations (NCHW, as in PyTorch)
    w1: (C // r, C)  first Linear weight (PyTorch (out_features, in_features))
    w2: (C, C // r)  second Linear weight
    """
    B, C, H, W = x.shape
    HW = H * W
    inv_hw = 1.0 / float(HW)
    x3 = x.reshape(B, C, HW)                                 # free reshape from NCHW

    capacity = _vmem_capacity_bytes()
    vmem_limit = min(capacity // 2, 64 * 1024 * 1024)        # ~32 MiB on v7x, ~64 MiB otherwise

    slab_bytes = _padded_tile_bytes(C, HW, x.dtype)          # one batch element, padded VMEM tile
    w_live_bytes = 2 * (_padded_tile_bytes(*w1.shape, w1.dtype)
                        + _padded_tile_bytes(*w2.shape, w2.dtype))  # double-buffered weights

    single_pass_fits = (4 * slab_bytes + w_live_bytes + _VMEM_HEADROOM_BYTES) <= vmem_limit
    if single_pass_fits and not force_two_pass:
        out3 = _se_single_pass(x3, w1, w2, inv_hw=inv_hw, vmem_limit=vmem_limit,
                               slab_bytes=slab_bytes, w_live_bytes=w_live_bytes)
    else:
        out3 = _se_two_pass(x3, w1, w2, inv_hw=inv_hw, vmem_limit=vmem_limit)
    return out3.reshape(B, C, H, W)


def se_reference(x, w1, w2):
    """Pure-JAX reference matching the PyTorch module."""
    se = jnp.mean(x, axis=(2, 3))                 # AdaptiveAvgPool2d(1) + view
    h = jnp.maximum(se @ w1.T, 0.0)               # Linear(C, C//r, bias=False) + ReLU
    s = jax.nn.sigmoid(h @ w2.T)                  # Linear(C//r, C, bias=False) + Sigmoid
    return x * s[:, :, None, None]


def _run_case(key, B, C, H, W, r, force_two_pass=False):
    k_x, k_w1, k_w2 = jax.random.split(key, 3)
    x = jax.random.normal(k_x, (B, C, H, W), dtype=jnp.float32)
    # PyTorch Linear weight shapes: (out_features, in_features)
    w1 = jax.random.normal(k_w1, (C // r, C), dtype=jnp.float32) * 0.1
    w2 = jax.random.normal(k_w2, (C, C // r), dtype=jnp.float32) * 0.1

    out = se_module(x, w1, w2, force_two_pass=force_two_pass)
    jax.block_until_ready(out)

    ref = se_reference(x, w1, w2)
    assert out.shape == (B, C, H, W)
    assert jnp.allclose(out, ref, atol=1e-5, rtol=1e-5), (
        f"mismatch vs reference for shape {(B, C, H, W)} two_pass={force_two_pass}")


if __name__ == "__main__":
    key = jax.random.PRNGKey(0)
    k1, k2, k3, k4, k5 = jax.random.split(key, 5)

    # Single-pass path, lane-aligned spatial (HW = 256).
    _run_case(k1, B=2, C=16, H=16, W=16, r=4)
    # Single-pass path, non-lane-aligned spatial (HW = 49): masked stores, no transpose.
    _run_case(k2, B=2, C=128, H=7, W=7, r=4)
    # Single-pass path, odd batch.
    _run_case(k3, B=3, C=32, H=8, W=8, r=4)
    # Two-pass fallback exercised at small shapes.
    _run_case(k4, B=2, C=16, H=8, W=8, r=4, force_two_pass=True)
    _run_case(k5, B=2, C=128, H=7, W=7, r=4, force_two_pass=True)

    print("KERNEL_OK")
</pallas_src>

<mosaic_0001>
module attributes {stable_mosaic.version = 11 : i64} {
  func.func @_se_kernel(%arg0: i32, %arg1: memref<2x16x256xf32, #tpu.memory_space<vmem>>, %arg2: memref<4x16xf32, #tpu.memory_space<vmem>>, %arg3: memref<16x4xf32, #tpu.memory_space<vmem>>, %arg4: memref<2x16x256xf32, #tpu.memory_space<vmem>>) attributes {dimension_semantics = [#tpu.dimension_semantics<parallel>], iteration_bounds = array<i64: 1>, scalar_prefetch = 0 : i64, scratch_operands = 0 : i64, tpu.core_type = #tpu.core_type<tc>, window_params = [{transform_indices = @transform_0, window_bounds = array<i64: 2, 16, 256>}, {pipeline_mode = #tpu.pipeline_mode<synchronous>, transform_indices = @transform_1, window_bounds = array<i64: 4, 16>}, {pipeline_mode = #tpu.pipeline_mode<synchronous>, transform_indices = @transform_2, window_bounds = array<i64: 16, 4>}, {transform_indices = @transform_3, window_bounds = array<i64: 2, 16, 256>}]} {
    %c0 = arith.constant 0 : index
    %c0_0 = arith.constant 0 : index
    %c0_1 = arith.constant 0 : index
    %0 = vector.load %arg1[%c0, %c0_0, %c0_1] : memref<2x16x256xf32, #tpu.memory_space<vmem>>, vector<2x16x256xf32>
    %cst = arith.constant dense<0.000000e+00> : vector<2x16xf32>
    %1 = vector.multi_reduction <add>, %0, %cst [2] : vector<2x16x256xf32> to vector<2x16xf32>
    %cst_2 = arith.constant 3.906250e-03 : f32
    %2 = vector.broadcast %cst_2 : f32 to vector<2x16xf32>
    %3 = arith.mulf %1, %2 : vector<2x16xf32>
    %c0_3 = arith.constant 0 : index
    %c0_4 = arith.constant 0 : index
    %4 = vector.load %arg2[%c0_3, %c0_4] : memref<4x16xf32, #tpu.memory_space<vmem>>, vector<4x16xf32>
    %cst_5 = arith.constant dense<0.000000e+00> : vector<2x4xf32>
    %5 = tpu.matmul %3, %4, %cst_5 {dimension_numbers = #tpu.dot_dimension_numbers<[1], [1], [0], [0], [0, 0, 1, 0], [], []>} : vector<2x16xf32>, vector<4x16xf32>, vector<2x4xf32> -> vector<2x4xf32>
    %cst_6 = arith.constant 0.000000e+00 : f32
    %6 = vector.broadcast %cst_6 : f32 to vector<2x4xf32>
    %7 = arith.maximumf %5, %6 : vector<2x4xf32>
    %c0_7 = arith.constant 0 : index
    %c0_8 = arith.constant 0 : index
    %8 = vector.load %arg3[%c0_7, %c0_8] : memref<16x4xf32, #tpu.memory_space<vmem>>, vector<16x4xf32>
    %cst_9 = arith.constant dense<0.000000e+00> : vector<2x16xf32>
    %9 = tpu.matmul %7, %8, %cst_9 {dimension_numbers = #tpu.dot_dimension_numbers<[1], [1], [0], [0], [0, 0, 1, 0], [], []>} : vector<2x4xf32>, vector<16x4xf32>, vector<2x16xf32> -> vector<2x16xf32>
    %10 = arith.negf %9 : vector<2x16xf32>
    %11 = math.exp %10 : vector<2x16xf32>
    %cst_10 = arith.constant 1.000000e+00 : f32
    %12 = vector.broadcast %cst_10 : f32 to vector<2x16xf32>
    %13 = arith.addf %12, %11 : vector<2x16xf32>
    %14 = arith.divf %12, %13 : vector<2x16xf32>
    %15 = vector.shape_cast %14 : vector<2x16xf32> to vector<2x16x1xf32>
    %16 = vector.broadcast %15 : vector<2x16x1xf32> to vector<2x16x256xf32>
    %17 = arith.mulf %0, %16 : vector<2x16x256xf32>
    %c0_11 = arith.constant 0 : index
    %c0_12 = arith.constant 0 : index
    %c0_13 = arith.constant 0 : index
    %18 = vector.load %arg4[%c0_11, %c0_12, %c0_13] : memref<2x16x256xf32, #tpu.memory_space<vmem>>, vector<2x16x256xf32>
    tpu.vector_store %arg4[%c0_11, %c0_12, %c0_13], %17 {strides = array<i32>} : memref<2x16x256xf32, #tpu.memory_space<vmem>>, vector<2x16x256xf32>,
    return
  }
  func.func @transform_0(%arg0: i32) -> (i32, i32, i32) {
    %c0_i32 = arith.constant 0 : i32
    %c0_i32_0 = arith.constant 0 : i32
    %c0_i32_1 = arith.constant 0 : i32
    return %arg0, %c0_i32, %c0_i32_0 : i32, i32, i32
  }
  func.func @transform_1(%arg0: i32) -> (i32, i32) {
    %c0_i32 = arith.constant 0 : i32
    %c0_i32_0 = arith.constant 0 : i32
    %c0_i32_1 = arith.constant 0 : i32
    return %c0_i32, %c0_i32_0 : i32, i32
  }
  func.func @transform_2(%arg0: i32) -> (i32, i32) {
    %c0_i32 = arith.constant 0 : i32
    %c0_i32_0 = arith.constant 0 : i32
    %c0_i32_1 = arith.constant 0 : i32
    return %c0_i32, %c0_i32_0 : i32, i32
  }
  func.func @transform_3(%arg0: i32) -> (i32, i32, i32) {
    %c0_i32 = arith.constant 0 : i32
    %c0_i32_0 = arith.constant 0 : i32
    %c0_i32_1 = arith.constant 0 : i32
    return %arg0, %c0_i32, %c0_i32_0 : i32, i32, i32
  }
}

</mosaic_0001>

<llo_original>
// kernel: tpu_custom_call.1
$region0: #{tpu_custom_call.1}
  #allocation0 [shape = 'u32[]', space=smem, size = 0x4, offset = 0x4, fixed_abs, tag = 'smem constant byte address 0x4 - core index']
  #allocation1 [shape = 'u32[144,128]{1,0:T(1,128)}', space=vmem, size = 0x12000, scoped, tag = 'internal scratch']
  %s0 = inlined_call_operand.hbm [shape: f32[2,16,256], index: 0, kind: input, shape index: {}]
  %s1 = inlined_call_operand.vmem [shape: f32[4,16], index: 1, kind: input, shape index: {}]
  %s2 = inlined_call_operand.vmem [shape: f32[16,4], index: 2, kind: input, shape index: {}]
  %s3 = inlined_call_operand.hbm [shape: f32[2,16,256], index: 3, kind: output, shape index: {}]
  %s4 = sld [smem:[#allocation0]]
  $region26: #{tpu_custom_call.1} parent=0
    _
  %s6 = ssub.s32 1, %s4
  %s7 = scalar_select 0, %s6, %s4
  $region1: #{tpu_custom_call.1} parent=0
    #allocation2 [shape = 'u8[32768]{0}', space=vmem, size = 0x8000, scoped, tag = 'input window, operand 0, single buffered']
    #allocation3 [shape = 's32[1]{0}', space=sflag, size = 0x4, scoped, tag = 'scoped memory for tpu_custom_call.1']
    #allocation4 [shape = 's32[1]{0}', space=sflag, size = 0x4, scoped, tag = 'scoped memory for tpu_custom_call.1']
    #allocation5 [shape = 'u8[32768]{0}', space=vmem, size = 0x8000, scoped, tag = 'output window, operand 0, single buffered']
    %8 = vsyncpa [#allocation3], 0
    %9 = vsyncpa [#allocation4], 0
    // Predicated region
    $region2: #{tpu_custom_call.1} parent=1 // pred_check
      _
    $region3: #{tpu_custom_call.1} parent=1 // pred_check_branch
      %11 = sbr.rel (0) target = $region5
    $region4: #{tpu_custom_call.1} parent=1 // pred_region
      %s13 = ssub.s32 1024, 1024
      %14 = vsyncadd [#allocation3], %s13
      %s15 = sshll.u32 [#allocation2], 4
      %s16 = int_to_ptr.vmem [resolvable:$true] %s15
      %21 = dma.hbm_to_vmem [thread:$0]  %s0, 1024, %s16, [#allocation3], 256, 256, 16
    $region5: #{tpu_custom_call.1} parent=1 // pred_fallthru
      _
    // Predicated region
    $region6: #{tpu_custom_call.1} parent=1 // pred_check
      _
    $region7: #{tpu_custom_call.1} parent=1 // pred_check_branch
      %23 = sbr.rel (0) target = $region9
    $region8: #{tpu_custom_call.1} parent=1 // pred_region
      _
    $region9: #{tpu_custom_call.1} parent=1 // pred_fallthru
      _
    // Predicated region
    $region10: #{tpu_custom_call.1} parent=1 // pred_check
      _
    $region11: #{tpu_custom_call.1} parent=1 // pred_check_branch
      %25 = sbr.rel (0) target = $region13
    $region12: #{tpu_custom_call.1} parent=1 // pred_region
      _
    $region13: #{tpu_custom_call.1} parent=1 // pred_fallthru
      _
    // Predicated region
    $region14: #{tpu_custom_call.1} parent=1 // pred_check
      _
    $region15: #{tpu_custom_call.1} parent=1 // pred_check_branch
      %27 = sbr.rel (0) target = $region17
    $region16: #{tpu_custom_call.1} parent=1 // pred_region
      %28 = dma.done [#allocation3], 1024
    $region17: #{tpu_custom_call.1} parent=1 // pred_fallthru
      _
    %v29 = vld [vmem:[#allocation2] sm:$0xff]
    %v30 = vld [vmem:[#allocation2 + $0x8] sm:$0xff]
    %v31 = vld [vmem:[#allocation2 + $0x10] sm:$0xff]
    %v32 = vld [vmem:[#allocation2 + $0x18] sm:$0xff]
    %v33 = vld [vmem:[#allocation2 + $0x20] sm:$0xff]
    %v34 = vld [vmem:[#allocation2 + $0x28] sm:$0xff]
    %v35 = vld [vmem:[#allocation2 + $0x30] sm:$0xff]
    %v36 = vld [vmem:[#allocation2 + $0x38] sm:$0xff]
    %v37 = vadd.f32 %v29, %v30
    %38 = vadd.xlane.f32.xlu0 %v37
    %v39 = vpop.xlane.xlu0 %38
    %v40 = vadd.f32 %v31, %v32
    %41 = vadd.xlane.f32.xlu0 %v40
    %v42 = vpop.xlane.xlu0 %41
    %v43 = vadd.f32 %v33, %v34
    %44 = vadd.xlane.f32.xlu0 %v43
    %v45 = vpop.xlane.xlu0 %44
    %v46 = vadd.f32 %v35, %v36
    %47 = vadd.xlane.f32.xlu0 %v46
    %v48 = vpop.xlane.xlu0 %47
    %v49 = vmul.f32 %v39, 0.00390625
    %v50 = vmul.f32 %v42, 0.00390625
    %v51 = vmul.f32 %v45, 0.00390625
    %v52 = vmul.f32 %v48, 0.00390625
    %v53 = vld [vmem:[%s1] sm:$0xf]
    %v58 = vlaneseq
    %v59 = vand.u32 %v58, 127
    %v60 = vlaneseq
    %v61 = vshrl.u32 %v60, 7
    %v62 = vsub.s32 %v59, %v61
    %v63 = vrot.slane %v49, %v62
    %v64 = vadd.s32 %v59, 4294967288
    %v65 = vlaneseq
    %v66 = vshrl.u32 %v65, 7
    %v67 = vsub.s32 %v64, %v66
    %v68 = vrot.slane %v50, %v67
    %vm69 = vcmask 130112
    %v70 = vsel %vm69, %v68, %v63
    %v71 = vlaneseq
    %v72 = vshrl.u32 %v71, 7
    %v73 = vsub.s32 %v59, %v72
    %v74 = vrot.slane %v51, %v73
    %v75 = vlaneseq
    %v76 = vshrl.u32 %v75, 7
    %v77 = vsub.s32 %v64, %v76
    %v78 = vrot.slane %v52, %v77
    %v79 = vsel %vm69, %v78, %v74
    %vm80 = vcmask 1041409
    %v81 = vsel %vm80, %v79, %v70
    %vm82 = vcmask 130048
    %v83 = vsel %vm82, %v81, 0
    %v86 = vsel %vm82, %v53, 0
    %88 = vmatprep.subr.mxu0 0.0
    %89 = vmatpush1.xpose.msra.mxu0 0.0
    %90 = vmatprep.subr.mxu0 0.0
    %91 = vmatpush1.xpose.msra.mxu0 0.0
    %92 = vmatprep.subr.mxu0 0.0
    %93 = vmatpush1.xpose.msra.mxu0 0.0
    %94 = vmatprep.subr.mxu0 0.0
    %95 = vmatpush1.xpose.msra.mxu0 0.0
    %96 = vmatprep.subr.mxu0 0.0
    %97 = vmatpush1.xpose.msra.mxu0 0.0
    %98 = vmatprep.subr.mxu0 0.0
    %99 = vmatpush1.xpose.msra.mxu0 0.0
    %100 = vmatprep.subr.mxu0 0.0
    %101 = vmatpush1.xpose.msra.mxu0 0.0
    %102 = vmatprep.subr.mxu0 0.0
    %103 = vmatpush1.xpose.msra.mxu0 0.0
    %104 = vmatprep.subr.mxu0 0.0
    %105 = vmatpush1.xpose.msra.mxu0 0.0
    %106 = vmatprep.subr.mxu0 0.0
    %107 = vmatpush1.xpose.msra.mxu0 0.0
    %108 = vmatprep.subr.mxu0 0.0
    %109 = vmatpush1.xpose.msra.mxu0 0.0
    %110 = vmatprep.subr.mxu0 0.0
    %111 = vmatpush1.xpose.msra.mxu0 0.0
    %112 = vmatprep.subr.mxu0 0.0
    %113 = vmatpush1.xpose.msra.mxu0 0.0
    %114 = vmatprep.subr.mxu0 0.0
    %115 = vmatpush1.xpose.msra.mxu0 0.0
    %116 = vmatprep.subr.mxu0 0.0
    %117 = vmatpush1.xpose.msra.mxu0 0.0
    %118 = vmatprep.subr.mxu0 0.0
    %119 = vmatpush1.xpose.msra.mxu0 %v86
    %120 = vmatprep.subr.mxu0 0.0
    %121 = vmatpush2.xpose.msra.mxu0 0.0
    %122 = vmatprep.subr.mxu0 0.0
    %123 = vmatpush2.xpose.msra.mxu0 0.0
    %124 = vmatprep.subr.mxu0 0.0
    %125 = vmatpush2.xpose.msra.mxu0 0.0
    %126 = vmatprep.subr.mxu0 0.0
    %127 = vmatpush2.xpose.msra.mxu0 0.0
    %128 = vmatprep.subr.mxu0 0.0
    %129 = vmatpush2.xpose.msra.mxu0 0.0
    %130 = vmatprep.subr.mxu0 0.0
    %131 = vmatpush2.xpose.msra.mxu0 0.0
    %132 = vmatprep.subr.mxu0 0.0
    %133 = vmatpush2.xpose.msra.mxu0 0.0
    %134 = vmatprep.subr.mxu0 0.0
    %135 = vmatpush2.xpose.msra.mxu0 0.0
    %136 = vmatprep.subr.mxu0 0.0
    %137 = vmatpush2.xpose.msra.mxu0 0.0
    %138 = vmatprep.subr.mxu0 0.0
    %139 = vmatpush2.xpose.msra.mxu0 0.0
    %140 = vmatprep.subr.mxu0 0.0
    %141 = vmatpush2.xpose.msra.mxu0 0.0
    %142 = vmatprep.subr.mxu0 0.0
    %143 = vmatpush2.xpose.msra.mxu0 0.0
    %144 = vmatprep.subr.mxu0 0.0
    %145 = vmatpush2.xpose.msra.mxu0 0.0
    %146 = vmatprep.subr.mxu0 0.0
    %147 = vmatpush2.xpose.msra.mxu0 0.0
    %148 = vmatprep.subr.mxu0 0.0
    %149 = vmatpush2.xpose.msra.mxu0 0.0
    %150 = vmatprep.subr.mxu0 0.0
    %151 = vmatpush2.xpose.msra.mxu0 0.0
    %152 = vmatprep.mubr.f32.mxu0 0.0
    %153 = vmatmul.mubr.f32.gmra.mxu0 %v83
    %v154 = vpop.f32.mrf.mxu0
    %v155 = vadd.f32 0.0, %v154
    %v156 = vpop.f32.mrf.mxu0
    %157 = vdwg.mxu0
    %v158 = vmax.f32 %v155, 0.0
    %v159 = vld [vmem:[%s2] sm:$0xff]
    %v160 = vld [vmem:[%s2 + $0x8] sm:$0xff]
    %vm161 = vcmask 31744
    %v163 = vsel %vm161, %v158, 0
    %v166 = vsel %vm161, %v159, 0
    %v169 = vsel %vm161, %v160, 0
    %171 = vmatprep.subr.mxu0 0.0
    %172 = vmatpush1.xpose.msra.mxu0 0.0
    %173 = vmatprep.subr.mxu0 0.0
    %174 = vmatpush1.xpose.msra.mxu0 0.0
    %175 = vmatprep.subr.mxu0 0.0
    %176 = vmatpush1.xpose.msra.mxu0 0.0
    %177 = vmatprep.subr.mxu0 0.0
    %178 = vmatpush1.xpose.msra.mxu0 0.0
    %179 = vmatprep.subr.mxu0 0.0
    %180 = vmatpush1.xpose.msra.mxu0 0.0
    %181 = vmatprep.subr.mxu0 0.0
    %182 = vmatpush1.xpose.msra.mxu0 0.0
    %183 = vmatprep.subr.mxu0 0.0
    %184 = vmatpush1.xpose.msra.mxu0 0.0
    %185 = vmatprep.subr.mxu0 0.0
    %186 = vmatpush1.xpose.msra.mxu0 0.0
    %187 = vmatprep.subr.mxu0 0.0
    %188 = vmatpush1.xpose.msra.mxu0 0.0
    %189 = vmatprep.subr.mxu0 0.0
    %190 = vmatpush1.xpose.msra.mxu0 0.0
    %191 = vmatprep.subr.mxu0 0.0
    %192 = vmatpush1.xpose.msra.mxu0 0.0
    %193 = vmatprep.subr.mxu0 0.0
    %194 = vmatpush1.xpose.msra.mxu0 0.0
    %195 = vmatprep.subr.mxu0 0.0
    %196 = vmatpush1.xpose.msra.mxu0 0.0
    %197 = vmatprep.subr.mxu0 0.0
    %198 = vmatpush1.xpose.msra.mxu0 0.0
    %199 = vmatprep.subr.mxu0 0.0
    %200 = vmatpush1.xpose.msra.mxu0 %v169
    %201 = vmatprep.subr.mxu0 0.0
    %202 = vmatpush1.xpose.msra.mxu0 %v166
    %203 = vmatprep.subr.mxu0 0.0
    %204 = vmatpush2.xpose.msra.mxu0 0.0
    %205 = vmatprep.subr.mxu0 0.0
    %206 = vmatpush2.xpose.msra.mxu0 0.0
    %207 = vmatprep.subr.mxu0 0.0
    %208 = vmatpush2.xpose.msra.mxu0 0.0
    %209 = vmatprep.subr.mxu0 0.0
    %210 = vmatpush2.xpose.msra.mxu0 0.0
    %211 = vmatprep.subr.mxu0 0.0
    %212 = vmatpush2.xpose.msra.mxu0 0.0
    %213 = vmatprep.subr.mxu0 0.0
    %214 = vmatpush2.xpose.msra.mxu0 0.0
    %215 = vmatprep.subr.mxu0 0.0
    %216 = vmatpush2.xpose.msra.mxu0 0.0
    %217 = vmatprep.subr.mxu0 0.0
    %218 = vmatpush2.xpose.msra.mxu0 0.0
    %219 = vmatprep.subr.mxu0 0.0
    %220 = vmatpush2.xpose.msra.mxu0 0.0
    %221 = vmatprep.subr.mxu0 0.0
    %222 = vmatpush2.xpose.msra.mxu0 0.0
    %223 = vmatprep.subr.mxu0 0.0
    %224 = vmatpush2.xpose.msra.mxu0 0.0
    %225 = vmatprep.subr.mxu0 0.0
    %226 = vmatpush2.xpose.msra.mxu0 0.0
    %227 = vmatprep.subr.mxu0 0.0
    %228 = vmatpush2.xpose.msra.mxu0 0.0
    %229 = vmatprep.subr.mxu0 0.0
    %230 = vmatpush2.xpose.msra.mxu0 0.0
    %231 = vmatprep.subr.mxu0 0.0
    %232 = vmatpush2.xpose.msra.mxu0 0.0
    %233 = vmatprep.subr.mxu0 0.0
    %234 = vmatpush2.xpose.msra.mxu0 0.0
    %235 = vmatprep.mubr.f32.mxu0 0.0
    %236 = vmatmul.mubr.f32.gmra.mxu0 %v163
    %v237 = vpop.f32.mrf.mxu0
    %v238 = vadd.f32 0.0, %v237
    %v239 = vpop.f32.mrf.mxu0
    %240 = vdwg.mxu0
    %v241 = vxor.u32 %v238, 2147483648
    %v242 = vmul.f32 %v241, 1.442695
    %v243 = vpow.pop %v242
    %v244 = vadd.f32 %v243, 1.0
    %v245 = vrcp.pop %v244
    %v246 = vmul.f32 1.0, %v245
    %v247 = vlaneseq
    %v248 = vshrl.u32 %v247, 7
    %v249 = vsub.s32 0, %v248
    %v250 = vrot.slane %v246, %v249
    %252 = vbcast.lane.b32.xlu0 %v250, 256
    %v253 = vpop.permute.xlu0 %252
    %s255 = sor.u32 256, 8
    %256 = vbcast.lane.b32.xlu0 %v250, %s255
    %v257 = vpop.permute.xlu0 %256
    %v258 = vlaneseq
    %v259 = vshrl.u32 %v258, 7
    %v260 = vsub.s32 1, %v259
    %v261 = vrot.slane %v246, %v260
    %263 = vbcast.lane.b32.xlu0 %v261, 256
    %v264 = vpop.permute.xlu0 %263
    %s266 = sor.u32 256, 8
    %267 = vbcast.lane.b32.xlu0 %v261, %s266
    %v268 = vpop.permute.xlu0 %267
    %v269 = vmul.f32 %v29, %v253
    %v270 = vmul.f32 %v30, %v253
    %v271 = vmul.f32 %v31, %v257
    %v272 = vmul.f32 %v32, %v257
    %v273 = vmul.f32 %v33, %v264
    %v274 = vmul.f32 %v34, %v264
    %v275 = vmul.f32 %v35, %v268
    %v276 = vmul.f32 %v36, %v268
    %277 = vst [vmem:[#allocation5] sm:$0xff] %v269
    %278 = vst [vmem:[#allocation5 + $0x8] sm:$0xff] %v270
    %279 = vst [vmem:[#allocation5 + $0x10] sm:$0xff] %v271
    %280 = vst [vmem:[#allocation5 + $0x18] sm:$0xff] %v272
    %281 = vst [vmem:[#allocation5 + $0x20] sm:$0xff] %v273
    %282 = vst [vmem:[#allocation5 + $0x28] sm:$0xff] %v274
    %283 = vst [vmem:[#allocation5 + $0x30] sm:$0xff] %v275
    %284 = vst [vmem:[#allocation5 + $0x38] sm:$0xff] %v276
    // Predicated region
    $region18: #{tpu_custom_call.1} parent=1 // pred_check
      _
    $region19: #{tpu_custom_call.1} parent=1 // pred_check_branch
      %286 = sbr.rel (0) target = $region21
    $region20: #{tpu_custom_call.1} parent=1 // pred_region
      %s288 = ssub.s32 1024, 1024
      %289 = vsyncadd [#allocation4], %s288
      %s290 = sshll.u32 [#allocation5], 4
      %s291 = int_to_ptr.vmem [resolvable:$true] %s290
      %296 = dma.vmem_to_hbm [thread:$0]  %s291, 1024, %s3, [#allocation4], 256, 256, 16
    $region21: #{tpu_custom_call.1} parent=1 // pred_fallthru
      _
    // Predicated region
    $region22: #{tpu_custom_call.1} parent=1 // pred_check
      _
    $region23: #{tpu_custom_call.1} parent=1 // pred_check_branch
      %298 = sbr.rel (0) target = $region25
    $region24: #{tpu_custom_call.1} parent=1 // pred_region
      %299 = dma.done [#allocation4], 1024
    $region25: #{tpu_custom_call.1} parent=1 // pred_fallthru
      _
    %300 = vsyncpa [#allocation3], 1
    %301 = vsyncpa [#allocation4], 1

</llo_original>
